<compile_context>
chip_gen: v7x
topology: tpu7x:2x2x1
jax: 0.10.0
libtpu: 0.0.40
codegen_flags: <defaults>
</compile_context>

<pallas_src>
import jax
import jax.numpy as jnp
from jax.experimental import pallas as pl
from jax.experimental.pallas import tpu as pltpu


def _round_up(x, m):
    return (x + m - 1) // m * m


def attention_kernel(mask_ref, q_ref, pk_ref, val_ref, wq_ref, selwe_ref,
                     rep_ref, selv_ref, ctx_ref, alphas_ref):
    # Per-grid-step block shapes (TB = batch rows per step):
    #   mask_ref [TB, M] int32       q_ref   [TB, Q]      (bf16)
    #   pk_ref   [TB, M*H] (bf16)    val_ref [TB, M*V]    (bf16)
    #   wq_ref   [Q, M*H]   query weight, transposed + column-tiled M times
    #   selwe_ref [M*H, M]  block-diagonal energy weights (we per H-group)
    #   rep_ref   [M, M*V]  0/1: broadcast alphas over each V-wide lane group
    #   selv_ref  [M*V, V]  0/1: sum over the M lane groups
    #   ctx_ref   [V, TB]   alphas_ref [M, TB]   (outputs stored batch-on-lanes)
    f32 = jnp.float32

    # Query projection on the MXU, already broadcast over source positions:
    # proj_qm[b, m*H + h] = (q @ Wq^T)[b, h]   because Wq^T is column-tiled.
    proj_qm = jnp.dot(q_ref[...], wq_ref[...],
                      preferred_element_type=f32)                  # [TB, M*H]

    # tanh(query + proj_key) on fully dense lanes (no H->128 padding).
    t = jnp.tanh(proj_qm + pk_ref[...].astype(f32))                # [TB, M*H]

    # Energy: scores[b, m] = sum_h t[b, m*H + h] * we[h]  via block-diag matmul
    # on the otherwise-idle MXU (no [M,H] relayout, no strided lane reduce).
    scores = jnp.dot(t, selwe_ref[...],
                     preferred_element_type=f32)                   # [TB, M]

    # masked_fill(mask == 0, -inf) + softmax over source positions (exact).
    scores = jnp.where(mask_ref[...] != 0, scores, -jnp.inf)
    smax = jnp.max(scores, axis=-1, keepdims=True)
    e = jnp.exp(scores - smax)
    alphas = e / jnp.sum(e, axis=-1, keepdims=True)                # [TB, M]

    # context[b, v] = sum_m alphas[b, m] * value[b, m, v]:
    #   1) alphas @ rep  broadcasts alphas over each V-wide lane group (MXU)
    #   2) dense VPU multiply with the lane-folded value
    #   3) @ selv group-reduces over M (MXU)
    alphas_rep = jnp.dot(alphas, rep_ref[...],
                         preferred_element_type=f32)               # [TB, M*V]
    prod = alphas_rep * val_ref[...].astype(f32)                   # [TB, M*V]
    ctx = jnp.dot(prod, selv_ref[...],
                  preferred_element_type=f32)                      # [TB, V]

    # Lane-dense stores: batch on lanes; un-transposed in the wrapper.
    alphas_ref[...] = alphas.T.astype(alphas_ref.dtype)            # [M, TB]
    ctx_ref[...] = ctx.T.astype(ctx_ref.dtype)                     # [V, TB]


def attention_forward(mask, query, proj_key, value, wq, we, *,
                      block_b=None, stream_dtype=jnp.bfloat16):
    """Additive attention forward.

    mask [B,1,M], query [B,1,Q], proj_key [B,M,H], value [B,M,V],
    wq [H,Q] (torch Linear layout), we [1,H].
    Returns (context [B,1,V], alphas [B,1,M]).
    """
    B, _, Q = query.shape
    _, M, H = proj_key.shape
    V = value.shape[-1]
    out_dtype = query.dtype
    f32 = jnp.float32

    # ---- batch blocking (grid is a serial loop per TensorCore) -------------
    # Sweep block_b (128/256/512...); keep >= 2 blocks for v7x's 2 TCs and cap
    # for v7x's 64 MiB VMEM (these tile sizes are far below that).
    if block_b is None:
        block_b = 256
    if B <= block_b or block_b < 128:
        block_b = _round_up(B, 8)          # single block covering the batch
    else:
        block_b = _round_up(block_b, 128)  # transposed outputs need 128-lane blocks
    B_pad = _round_up(B, block_b)
    n_blocks = B_pad // block_b

    def pad_b(x):
        if x.shape[0] == B_pad:
            return x
        return jnp.pad(x, [(0, B_pad - x.shape[0])] + [(0, 0)] * (x.ndim - 1))

    # ---- lane-folded, low-precision input streams (reshapes are free) ------
    mask2 = pad_b(mask.reshape(B, M).astype(jnp.int32))               # [B_pad, M]
    q2 = pad_b(query.reshape(B, Q)).astype(stream_dtype)              # [B_pad, Q]
    pk2 = pad_b(proj_key.reshape(B, M * H)).astype(stream_dtype)      # [B_pad, M*H]
    val2 = pad_b(value.reshape(B, M * V)).astype(stream_dtype)        # [B_pad, M*V]

    # ---- small constant operands (constant index_map -> fetched once) ------
    wq_tiled = jnp.tile(wq.T, (1, M)).astype(stream_dtype)            # [Q, M*H]
    we_vec = we.reshape(H).astype(f32)
    eye_m = jnp.eye(M, dtype=f32)
    sel_we = (eye_m[:, None, :] * we_vec[None, :, None]).reshape(M * H, M)
    rep_m = jnp.repeat(eye_m, V, axis=1)                              # [M, M*V]
    sel_v = jnp.tile(jnp.eye(V, dtype=f32), (M, 1))                   # [M*V, V]

    out_shape = (
        jax.ShapeDtypeStruct((V, B_pad), out_dtype),   # context^T (lane-dense)
        jax.ShapeDtypeStruct((M, B_pad), out_dtype),   # alphas^T  (lane-dense)
    )
    grid_spec = pltpu.PrefetchScalarGridSpec(
        num_scalar_prefetch=0,
        grid=(n_blocks,),
        in_specs=[
            pl.BlockSpec((block_b, M), lambda b: (b, 0)),          # mask
            pl.BlockSpec((block_b, Q), lambda b: (b, 0)),          # query
            pl.BlockSpec((block_b, M * H), lambda b: (b, 0)),      # proj_key (folded)
            pl.BlockSpec((block_b, M * V), lambda b: (b, 0)),      # value (folded)
            pl.BlockSpec((Q, M * H), lambda b: (0, 0)),            # Wq^T tiled
            pl.BlockSpec((M * H, M), lambda b: (0, 0)),            # block-diag we
            pl.BlockSpec((M, M * V), lambda b: (0, 0)),            # alphas repeat
            pl.BlockSpec((M * V, V), lambda b: (0, 0)),            # group-sum
        ],
        out_specs=(
            pl.BlockSpec((V, block_b), lambda b: (0, b)),
            pl.BlockSpec((M, block_b), lambda b: (0, b)),
        ),
    )
    ctx_t, al_t = pl.pallas_call(
        attention_kernel,
        out_shape=out_shape,
        grid_spec=grid_spec,
        compiler_params=pltpu.CompilerParams(
            dimension_semantics=("parallel",)),
    )(mask2, q2, pk2, val2, wq_tiled, sel_we, rep_m, sel_v)

    # Undo the transposed (lane-dense) output layout; drop padded batch rows
    # (they are fully masked and therefore NaN, matching torch -inf semantics).
    context = ctx_t.T[:B].reshape(B, 1, V)
    alphas = al_t.T[:B].reshape(B, 1, M)
    return context, alphas


def attention_reference(mask, query, proj_key, value, wq, we):
    proj_q = jnp.einsum('bnq,hq->bnh', query, wq)                 # [B,1,H]
    scores = jnp.einsum('bmh,oh->bmo', jnp.tanh(proj_q + proj_key), we)
    scores = jnp.transpose(scores, (0, 2, 1))                     # [B,1,M]
    scores = jnp.where(mask == 0, -jnp.inf, scores)
    alphas = jax.nn.softmax(scores, axis=-1)
    context = jnp.einsum('bnm,bmv->bnv', alphas, value)
    return context, alphas


def _bf16_round(x):
    return x.astype(jnp.bfloat16).astype(jnp.float32)


if __name__ == "__main__":
    hidden_size = 32
    key_size = 2 * hidden_size      # 64
    query_size = hidden_size        # 32
    B, M = 2, 8

    key = jax.random.PRNGKey(0)
    k_wk, k_wq, k_we, k_q, k_pk, k_v, k_len = jax.random.split(key, 7)

    # torch Linear layout: [out_features, in_features].
    # key_layer (wk) is defined in the module __init__ but unused in forward.
    wk = jax.random.normal(k_wk, (hidden_size, key_size), jnp.float32) * 0.1
    wq = jax.random.normal(k_wq, (hidden_size, query_size), jnp.float32) * 0.1
    we = jax.random.normal(k_we, (1, hidden_size), jnp.float32) * 0.1

    query = jax.random.normal(k_q, (B, 1, query_size), jnp.float32)
    proj_key = jax.random.normal(k_pk, (B, M, hidden_size), jnp.float32)
    value = jax.random.normal(k_v, (B, M, key_size), jnp.float32)
    lengths = jnp.array([6, 8], dtype=jnp.int32)
    mask = (jnp.arange(M)[None, None, :] < lengths[:, None, None]).astype(jnp.int32)

    # --- Test 1: default bf16 streams, tiny batch ---------------------------
    context, alphas = attention_forward(mask, query, proj_key, value, wq, we)
    jax.block_until_ready((context, alphas))
    ref_ctx, ref_al = attention_reference(mask, query, proj_key, value, wq, we)
    assert jnp.allclose(context, ref_ctx, atol=2.5e-2, rtol=2.5e-2)   # bf16 streams
    assert jnp.allclose(alphas, ref_al, atol=2.5e-2, rtol=2.5e-2)
    # Tight check against a reference fed the same bf16-rounded inputs.
    ref_ctx_b, ref_al_b = attention_reference(
        mask, _bf16_round(query), _bf16_round(proj_key), _bf16_round(value),
        _bf16_round(wq), we)
    assert jnp.allclose(context, ref_ctx_b, atol=2e-3, rtol=2e-3)
    assert jnp.allclose(alphas, ref_al_b, atol=2e-3, rtol=2e-3)
    assert bool(jnp.all(jnp.isfinite(context))) and bool(jnp.all(jnp.isfinite(alphas)))

    # --- Test 2: f32 streams, exact-math check -------------------------------
    ctx32, al32 = attention_forward(mask, query, proj_key, value, wq, we,
                                    stream_dtype=jnp.float32)
    jax.block_until_ready((ctx32, al32))
    assert jnp.allclose(ctx32, ref_ctx, atol=1e-4, rtol=1e-4)
    assert jnp.allclose(al32, ref_al, atol=1e-4, rtol=1e-4)

    # --- Test 3: multi-block grid (block_b=128), padded batch ----------------
    B2 = 300
    k_q2, k_pk2, k_v2, k_l2 = jax.random.split(jax.random.PRNGKey(1), 4)
    query2 = jax.random.normal(k_q2, (B2, 1, query_size), jnp.float32)
    proj_key2 = jax.random.normal(k_pk2, (B2, M, hidden_size), jnp.float32)
    value2 = jax.random.normal(k_v2, (B2, M, key_size), jnp.float32)
    lengths2 = jax.random.randint(k_l2, (B2,), 1, M + 1)
    mask2 = (jnp.arange(M)[None, None, :] < lengths2[:, None, None]).astype(jnp.int32)
    ctx_l, al_l = attention_forward(mask2, query2, proj_key2, value2, wq, we,
                                    block_b=128)
    jax.block_until_ready((ctx_l, al_l))
    ref_ctx_l, ref_al_l = attention_reference(
        mask2, _bf16_round(query2), _bf16_round(proj_key2), _bf16_round(value2),
        _bf16_round(wq), we)
    assert jnp.allclose(ctx_l, ref_ctx_l, atol=2e-3, rtol=2e-3)
    assert jnp.allclose(al_l, ref_al_l, atol=2e-3, rtol=2e-3)
    assert bool(jnp.all(jnp.isfinite(ctx_l))) and bool(jnp.all(jnp.isfinite(al_l)))

    print("KERNEL_OK")
</pallas_src>

<mosaic_0001>
module attributes {stable_mosaic.version = 11 : i64} {
  func.func @attention_kernel(%arg0: i32, %arg1: memref<8x8xi32, #tpu.memory_space<vmem>>, %arg2: memref<8x32xbf16, #tpu.memory_space<vmem>>, %arg3: memref<8x256xbf16, #tpu.memory_space<vmem>>, %arg4: memref<8x512xbf16, #tpu.memory_space<vmem>>, %arg5: memref<32x256xbf16, #tpu.memory_space<vmem>>, %arg6: memref<256x8xf32, #tpu.memory_space<vmem>>, %arg7: memref<8x512xf32, #tpu.memory_space<vmem>>, %arg8: memref<512x64xf32, #tpu.memory_space<vmem>>, %arg9: memref<64x8xf32, #tpu.memory_space<vmem>>, %arg10: memref<8x8xf32, #tpu.memory_space<vmem>>) attributes {dimension_semantics = [#tpu.dimension_semantics<parallel>], iteration_bounds = array<i64: 1>, scalar_prefetch = 0 : i64, scratch_operands = 0 : i64, tpu.core_type = #tpu.core_type<tc>, window_params = [{transform_indices = @transform_0, window_bounds = array<i64: 8, 8>}, {transform_indices = @transform_1, window_bounds = array<i64: 8, 32>}, {transform_indices = @transform_2, window_bounds = array<i64: 8, 256>}, {transform_indices = @transform_3, window_bounds = array<i64: 8, 512>}, {pipeline_mode = #tpu.pipeline_mode<synchronous>, transform_indices = @transform_4, window_bounds = array<i64: 32, 256>}, {pipeline_mode = #tpu.pipeline_mode<synchronous>, transform_indices = @transform_5, window_bounds = array<i64: 256, 8>}, {pipeline_mode = #tpu.pipeline_mode<synchronous>, transform_indices = @transform_6, window_bounds = array<i64: 8, 512>}, {pipeline_mode = #tpu.pipeline_mode<synchronous>, transform_indices = @transform_7, window_bounds = array<i64: 512, 64>}, {transform_indices = @transform_8, window_bounds = array<i64: 64, 8>}, {transform_indices = @transform_9, window_bounds = array<i64: 8, 8>}]} {
    %c0 = arith.constant 0 : index
    %c0_0 = arith.constant 0 : index
    %0 = vector.load %arg2[%c0, %c0_0] : memref<8x32xbf16, #tpu.memory_space<vmem>>, vector<8x32xbf16>
    %c0_1 = arith.constant 0 : index
    %c0_2 = arith.constant 0 : index
    %1 = vector.load %arg5[%c0_1, %c0_2] : memref<32x256xbf16, #tpu.memory_space<vmem>>, vector<32x256xbf16>
    %cst = arith.constant dense<0.000000e+00> : vector<8x256xf32>
    %2 = tpu.matmul %0, %1, %cst {dimension_numbers = #tpu.dot_dimension_numbers<[1], [0], [0], [1], [0, 0, 1, 1], [], []>} : vector<8x32xbf16>, vector<32x256xbf16>, vector<8x256xf32> -> vector<8x256xf32>
    %c0_3 = arith.constant 0 : index
    %c0_4 = arith.constant 0 : index
    %3 = vector.load %arg3[%c0_3, %c0_4] : memref<8x256xbf16, #tpu.memory_space<vmem>>, vector<8x256xbf16>
    %4 = arith.extf %3 : vector<8x256xbf16> to vector<8x256xf32>
    %5 = arith.addf %2, %4 : vector<8x256xf32>
    %6 = math.tanh %5 : vector<8x256xf32>
    %c0_5 = arith.constant 0 : index
    %c0_6 = arith.constant 0 : index
    %7 = vector.load %arg6[%c0_5, %c0_6] : memref<256x8xf32, #tpu.memory_space<vmem>>, vector<256x8xf32>
    %cst_7 = arith.constant dense<0.000000e+00> : vector<8x8xf32>
    %8 = tpu.matmul %6, %7, %cst_7 {dimension_numbers = #tpu.dot_dimension_numbers<[1], [0], [0], [1], [0, 0, 1, 1], [], []>} : vector<8x256xf32>, vector<256x8xf32>, vector<8x8xf32> -> vector<8x8xf32>
    %c0_8 = arith.constant 0 : index
    %c0_9 = arith.constant 0 : index
    %9 = vector.load %arg1[%c0_8, %c0_9] : memref<8x8xi32, #tpu.memory_space<vmem>>, vector<8x8xi32>
    %c0_i32 = arith.constant 0 : i32
    %10 = vector.broadcast %c0_i32 : i32 to vector<8x8xi32>
    %11 = arith.cmpi ne, %9, %10 : vector<8x8xi32>
    %cst_10 = arith.constant 0xFF800000 : f32
    %12 = vector.broadcast %cst_10 : f32 to vector<8x8xf32>
    %13 = arith.select %11, %8, %12 : vector<8x8xi1>, vector<8x8xf32>
    %cst_11 = arith.constant dense<0xFF800000> : vector<8xf32>
    %14 = vector.multi_reduction <maximumf>, %13, %cst_11 [1] : vector<8x8xf32> to vector<8xf32>
    %15 = vector.shape_cast %14 : vector<8xf32> to vector<8x1xf32>
    %16 = vector.broadcast %15 : vector<8x1xf32> to vector<8x8xf32>
    %17 = arith.subf %13, %16 : vector<8x8xf32>
    %18 = math.exp %17 : vector<8x8xf32>
    %cst_12 = arith.constant dense<0.000000e+00> : vector<8xf32>
    %19 = vector.multi_reduction <add>, %18, %cst_12 [1] : vector<8x8xf32> to vector<8xf32>
    %20 = vector.shape_cast %19 : vector<8xf32> to vector<8x1xf32>
    %21 = vector.broadcast %20 : vector<8x1xf32> to vector<8x8xf32>
    %22 = arith.divf %18, %21 : vector<8x8xf32>
    %c0_13 = arith.constant 0 : index
    %c0_14 = arith.constant 0 : index
    %23 = vector.load %arg7[%c0_13, %c0_14] : memref<8x512xf32, #tpu.memory_space<vmem>>, vector<8x512xf32>
    %cst_15 = arith.constant dense<0.000000e+00> : vector<8x512xf32>
    %24 = tpu.matmul %22, %23, %cst_15 {dimension_numbers = #tpu.dot_dimension_numbers<[1], [0], [0], [1], [0, 0, 1, 1], [], []>} : vector<8x8xf32>, vector<8x512xf32>, vector<8x512xf32> -> vector<8x512xf32>
    %c0_16 = arith.constant 0 : index
    %c0_17 = arith.constant 0 : index
    %25 = vector.load %arg4[%c0_16, %c0_17] : memref<8x512xbf16, #tpu.memory_space<vmem>>, vector<8x512xbf16>
    %26 = arith.extf %25 : vector<8x512xbf16> to vector<8x512xf32>
    %27 = arith.mulf %24, %26 : vector<8x512xf32>
    %c0_18 = arith.constant 0 : index
    %c0_19 = arith.constant 0 : index
    %28 = vector.load %arg8[%c0_18, %c0_19] : memref<512x64xf32, #tpu.memory_space<vmem>>, vector<512x64xf32>
    %cst_20 = arith.constant dense<0.000000e+00> : vector<8x64xf32>
    %29 = tpu.matmul %27, %28, %cst_20 {dimension_numbers = #tpu.dot_dimension_numbers<[1], [0], [0], [1], [0, 0, 1, 1], [], []>} : vector<8x512xf32>, vector<512x64xf32>, vector<8x64xf32> -> vector<8x64xf32>
    %30 = tpu.transpose %22, [1, 0] : vector<8x8xf32> -> vector<8x8xf32>
    %c0_21 = arith.constant 0 : index
    %c0_22 = arith.constant 0 : index
    %31 = vector.load %arg10[%c0_21, %c0_22] : memref<8x8xf32, #tpu.memory_space<vmem>>, vector<8x8xf32>
    tpu.vector_store %arg10[%c0_21, %c0_22], %30 {strides = array<i32>} : memref<8x8xf32, #tpu.memory_space<vmem>>, vector<8x8xf32>,
    %32 = tpu.transpose %29, [1, 0] : vector<8x64xf32> -> vector<64x8xf32>
    %c0_23 = arith.constant 0 : index
    %c0_24 = arith.constant 0 : index
    %33 = vector.load %arg9[%c0_23, %c0_24] : memref<64x8xf32, #tpu.memory_space<vmem>>, vector<64x8xf32>
    tpu.vector_store %arg9[%c0_23, %c0_24], %32 {strides = array<i32>} : memref<64x8xf32, #tpu.memory_space<vmem>>, vector<64x8xf32>,
    return
  }
  func.func @transform_0(%arg0: i32) -> (i32, i32) {
    %c0_i32 = arith.constant 0 : i32
    %c0_i32_0 = arith.constant 0 : i32
    return %arg0, %c0_i32 : i32, i32
  }
  func.func @transform_1(%arg0: i32) -> (i32, i32) {
    %c0_i32 = arith.constant 0 : i32
    %c0_i32_0 = arith.constant 0 : i32
    return %arg0, %c0_i32 : i32, i32
  }
  func.func @transform_2(%arg0: i32) -> (i32, i32) {
    %c0_i32 = arith.constant 0 : i32
    %c0_i32_0 = arith.constant 0 : i32
    return %arg0, %c0_i32 : i32, i32
  }
  func.func @transform_3(%arg0: i32) -> (i32, i32) {
    %c0_i32 = arith.constant 0 : i32
    %c0_i32_0 = arith.constant 0 : i32
    return %arg0, %c0_i32 : i32, i32
  }
  func.func @transform_4(%arg0: i32) -> (i32, i32) {
    %c0_i32 = arith.constant 0 : i32
    %c0_i32_0 = arith.constant 0 : i32
    %c0_i32_1 = arith.constant 0 : i32
    return %c0_i32, %c0_i32_0 : i32, i32
  }
  func.func @transform_5(%arg0: i32) -> (i32, i32) {
    %c0_i32 = arith.constant 0 : i32
    %c0_i32_0 = arith.constant 0 : i32
    %c0_i32_1 = arith.constant 0 : i32
    return %c0_i32, %c0_i32_0 : i32, i32
  }
  func.func @transform_6(%arg0: i32) -> (i32, i32) {
    %c0_i32 = arith.constant 0 : i32
    %c0_i32_0 = arith.constant 0 : i32
    %c0_i32_1 = arith.constant 0 : i32
    return %c0_i32, %c0_i32_0 : i32, i32
  }
  func.func @transform_7(%arg0: i32) -> (i32, i32) {
    %c0_i32 = arith.constant 0 : i32
    %c0_i32_0 = arith.constant 0 : i32
    %c0_i32_1 = arith.constant 0 : i32
    return %c0_i32, %c0_i32_0 : i32, i32
  }
  func.func @transform_8(%arg0: i32) -> (i32, i32) {
    %c0_i32 = arith.constant 0 : i32
    %c0_i32_0 = arith.constant 0 : i32
    return %c0_i32, %arg0 : i32, i32
  }
  func.func @transform_9(%arg0: i32) -> (i32, i32) {
    %c0_i32 = arith.constant 0 : i32
    %c0_i32_0 = arith.constant 0 : i32
    return %c0_i32, %arg0 : i32, i32
  }
}

</mosaic_0001>

<llo_original>
// kernel: tpu_custom_call.1
$region0: #{tpu_custom_call.1}
  #allocation0 [shape = 'u32[]', space=smem, size = 0x4, offset = 0x4, fixed_abs, tag = 'smem constant byte address 0x4 - core index']
  #allocation1 [shape = 'u32[144,128]{1,0:T(1,128)}', space=vmem, size = 0x12000, scoped, tag = 'internal scratch']
  %s0 = inlined_call_operand.vmem [shape: s32[8,8], index: 0, kind: input, shape index: {}]
  %s1 = inlined_call_operand.vmem [shape: bf16[8,32], index: 1, kind: input, shape index: {}]
  %s2 = inlined_call_operand.vmem [shape: bf16[8,256], index: 2, kind: input, shape index: {}]
  %s3 = inlined_call_operand.vmem [shape: bf16[8,512], index: 3, kind: input, shape index: {}]
  %s4 = inlined_call_operand.vmem [shape: bf16[32,256], index: 4, kind: input, shape index: {}]
  %s5 = inlined_call_operand.vmem [shape: f32[256,8], index: 5, kind: input, shape index: {}]
  %s6 = inlined_call_operand.vmem [shape: f32[8,512], index: 6, kind: input, shape index: {}]
  %s7 = inlined_call_operand.vmem [shape: f32[512,64], index: 7, kind: input, shape index: {}]
  %s8 = inlined_call_operand.vmem [shape: f32[64,8], index: 8, kind: output, shape index: {0}]
  %s9 = inlined_call_operand.hbm [shape: f32[8,8], index: 9, kind: output, shape index: {1}]
  %10 = xla_tuple %s8, %s9
  %s11 = sld [smem:[#allocation0]]
  $region50: #{tpu_custom_call.1} parent=0
    _
  %s13 = ssub.s32 1, %s11
  %s14 = scalar_select 0, %s13, %s11
  $region1: #{tpu_custom_call.1} parent=0
    #allocation2 [shape = 'u8[4096]{0}', space=vmem, size = 0x1000, scoped, tag = 'output window, operand 1, single buffered']
    #allocation3 [shape = 's32[1]{0}', space=sflag, size = 0x4, scoped, tag = 'scoped memory for tpu_custom_call.1']
    %15 = vsyncpa [#allocation3], 0
    // Predicated region
    $region2: #{tpu_custom_call.1} parent=1 // pred_check
      _
    $region3: #{tpu_custom_call.1} parent=1 // pred_check_branch
      %17 = sbr.rel (0) target = $region5
    $region4: #{tpu_custom_call.1} parent=1 // pred_region
      _
    $region5: #{tpu_custom_call.1} parent=1 // pred_fallthru
      _
    // Predicated region
    $region6: #{tpu_custom_call.1} parent=1 // pred_check
      _
    $region7: #{tpu_custom_call.1} parent=1 // pred_check_branch
      %19 = sbr.rel (0) target = $region9
    $region8: #{tpu_custom_call.1} parent=1 // pred_region
      _
    $region9: #{tpu_custom_call.1} parent=1 // pred_fallthru
      _
    // Predicated region
    $region10: #{tpu_custom_call.1} parent=1 // pred_check
      _
    $region11: #{tpu_custom_call.1} parent=1 // pred_check_branch
      %21 = sbr.rel (0) target = $region13
    $region12: #{tpu_custom_call.1} parent=1 // pred_region
      _
    $region13: #{tpu_custom_call.1} parent=1 // pred_fallthru
      _
    // Predicated region
    $region14: #{tpu_custom_call.1} parent=1 // pred_check
      _
    $region15: #{tpu_custom_call.1} parent=1 // pred_check_branch
      %23 = sbr.rel (0) target = $region17
    $region16: #{tpu_custom_call.1} parent=1 // pred_region
      _
    $region17: #{tpu_custom_call.1} parent=1 // pred_fallthru
      _
    // Predicated region
    $region18: #{tpu_custom_call.1} parent=1 // pred_check
      _
    $region19: #{tpu_custom_call.1} parent=1 // pred_check_branch
      %25 = sbr.rel (0) target = $region21
    $region20: #{tpu_custom_call.1} parent=1 // pred_region
      _
    $region21: #{tpu_custom_call.1} parent=1 // pred_fallthru
      _
    // Predicated region
    $region22: #{tpu_custom_call.1} parent=1 // pred_check
      _
    $region23: #{tpu_custom_call.1} parent=1 // pred_check_branch
      %27 = sbr.rel (0) target = $region25
    $region24: #{tpu_custom_call.1} parent=1 // pred_region
      _
    $region25: #{tpu_custom_call.1} parent=1 // pred_fallthru
      _
    // Predicated region
    $region26: #{tpu_custom_call.1} parent=1 // pred_check
      _
    $region27: #{tpu_custom_call.1} parent=1 // pred_check_branch
      %29 = sbr.rel (0) target = $region29
    $region28: #{tpu_custom_call.1} parent=1 // pred_region
      _
    $region29: #{tpu_custom_call.1} parent=1 // pred_fallthru
      _
    // Predicated region
    $region30: #{tpu_custom_call.1} parent=1 // pred_check
      _
    $region31: #{tpu_custom_call.1} parent=1 // pred_check_branch
      %31 = sbr.rel (0) target = $region33
    $region32: #{tpu_custom_call.1} parent=1 // pred_region
      _
    $region33: #{tpu_custom_call.1} parent=1 // pred_fallthru
      _
    %v33 = vld [vmem:[%s1] sm:$0xf]
    %v34 = vld [vmem:[%s4] sm:$0xff]
    %v35 = vld [vmem:[%s4 + $0x8] sm:$0xff]
    %v36 = vld [vmem:[%s4 + $0x10] sm:$0xff]
    %v37 = vld [vmem:[%s4 + $0x18] sm:$0xff]
    %v38 = vld [vmem:[%s2] sm:$0xff]
    %v39 = vunpack.c.l.bf16 %v38
    %v40 = vunpack.c.h.bf16 %v38
    %v45 = vunpack.c.l.b16 %v34
    %v46 = vunpack.c.h.b16 %v34
    %v47 = vunpack.c.l.b16 %v35
    %v48 = vunpack.c.h.b16 %v35
    %v49 = vunpack.c.l.b16 %v36
    %v50 = vunpack.c.h.b16 %v36
    %v51 = vunpack.c.l.b16 %v37
    %v52 = vunpack.c.h.b16 %v37
    %v53 = vpack.c.b16 %v47, %v45
    %v54 = vpack.c.b16 %v48, %v46
    %v55 = vpack.c.b16 %v51, %v49
    %v56 = vpack.c.b16 %v52, %v50
    %vm61 = vcmask 261120
    %v63 = vsel %vm61, %v33, 0
    %65 = vmatprep.subr.bf16.mxu0 %v54
    %66 = vmatpush1.bf16.msra.mxu0 %v53
    %67 = vmatprep.subr.bf16.mxu0 %v56
    %68 = vmatpush1.bf16.msra.mxu0 %v55
    %69 = vmatprep.subr.bf16.mxu0 0
    %70 = vmatpush1.bf16.msra.mxu0 0
    %71 = vmatprep.subr.bf16.mxu0 0
    %72 = vmatpush1.bf16.msra.mxu0 0
    %73 = vmatprep.subr.bf16.mxu0 0
    %74 = vmatpush1.bf16.msra.mxu0 0
    %75 = vmatprep.subr.bf16.mxu0 0
    %76 = vmatpush1.bf16.msra.mxu0 0
    %77 = vmatprep.subr.bf16.mxu0 0
    %78 = vmatpush1.bf16.msra.mxu0 0
    %79 = vmatprep.subr.bf16.mxu0 0
    %80 = vmatpush1.bf16.msra.mxu0 0
    %81 = vmatprep.subr.bf16.mxu0 0
    %82 = vmatpush1.bf16.msra.mxu0 0
    %83 = vmatprep.subr.bf16.mxu0 0
    %84 = vmatpush1.bf16.msra.mxu0 0
    %85 = vmatprep.subr.bf16.mxu0 0
    %86 = vmatpush1.bf16.msra.mxu0 0
    %87 = vmatprep.subr.bf16.mxu0 0
    %88 = vmatpush1.bf16.msra.mxu0 0
    %89 = vmatprep.subr.bf16.mxu0 0
    %90 = vmatpush1.bf16.msra.mxu0 0
    %91 = vmatprep.subr.bf16.mxu0 0
    %92 = vmatpush1.bf16.msra.mxu0 0
    %93 = vmatprep.subr.bf16.mxu0 0
    %94 = vmatpush1.bf16.msra.mxu0 0
    %95 = vmatprep.subr.bf16.mxu0 0
    %96 = vmatpush1.bf16.msra.mxu0 0
    %97 = vmatprep.mubr.bf16.mxu0 0
    %98 = vmatmul.mubr.bf16.gmra.mrb[0].mxu0 %v63
    %v99 = vpop.f32.mrb[0].mxu0
    %v100 = vadd.f32 %v39, %v99
    %v101 = vpop.f32.mrb[0].mxu0
    %v102 = vadd.f32 %v40, %v101
    %v103 = vpop.f32.mrb[0].mxu0
    %v104 = vpop.f32.mrb[0].mxu0
    %105 = vdwg.mxu0
    %v106 = vtanh.pop %v100
    %v107 = vtanh.pop %v102
    %v108 = vld [vmem:[%s5] sm:$0xff]
    %v109 = vld [vmem:[%s5 + $0x8] sm:$0xff]
    %v110 = vld [vmem:[%s5 + $0x10] sm:$0xff]
    %v111 = vld [vmem:[%s5 + $0x18] sm:$0xff]
    %v112 = vld [vmem:[%s5 + $0x20] sm:$0xff]
    %v113 = vld [vmem:[%s5 + $0x28] sm:$0xff]
    %v114 = vld [vmem:[%s5 + $0x30] sm:$0xff]
    %v115 = vld [vmem:[%s5 + $0x38] sm:$0xff]
    %v116 = vld [vmem:[%s5 + $0x40] sm:$0xff]
    %v117 = vld [vmem:[%s5 + $0x48] sm:$0xff]
    %v118 = vld [vmem:[%s5 + $0x50] sm:$0xff]
    %v119 = vld [vmem:[%s5 + $0x58] sm:$0xff]
    %v120 = vld [vmem:[%s5 + $0x60] sm:$0xff]
    %v121 = vld [vmem:[%s5 + $0x68] sm:$0xff]
    %v122 = vld [vmem:[%s5 + $0x70] sm:$0xff]
    %v123 = vld [vmem:[%s5 + $0x78] sm:$0xff]
    %v124 = vld [vmem:[%s5 + $0x80] sm:$0xff]
    %v125 = vld [vmem:[%s5 + $0x88] sm:$0xff]
    %v126 = vld [vmem:[%s5 + $0x90] sm:$0xff]
    %v127 = vld [vmem:[%s5 + $0x98] sm:$0xff]
    %v128 = vld [vmem:[%s5 + $0xa0] sm:$0xff]
    %v129 = vld [vmem:[%s5 + $0xa8] sm:$0xff]
    %v130 = vld [vmem:[%s5 + $0xb0] sm:$0xff]
    %v131 = vld [vmem:[%s5 + $0xb8] sm:$0xff]
    %v132 = vld [vmem:[%s5 + $0xc0] sm:$0xff]
    %v133 = vld [vmem:[%s5 + $0xc8] sm:$0xff]
    %v134 = vld [vmem:[%s5 + $0xd0] sm:$0xff]
    %v135 = vld [vmem:[%s5 + $0xd8] sm:$0xff]
    %v136 = vld [vmem:[%s5 + $0xe0] sm:$0xff]
    %v137 = vld [vmem:[%s5 + $0xe8] sm:$0xff]
    %v138 = vld [vmem:[%s5 + $0xf0] sm:$0xff]
    %v139 = vld [vmem:[%s5 + $0xf8] sm:$0xff]
    %140 = vmatprep.subr.mxu0 0.0
    %141 = vmatpush1.msra.mxu0 %v108
    %142 = vmatprep.subr.mxu0 0.0
    %143 = vmatpush1.msra.mxu0 %v109
    %144 = vmatprep.subr.mxu0 0.0
    %145 = vmatpush1.msra.mxu0 %v110
    %146 = vmatprep.subr.mxu0 0.0
    %147 = vmatpush1.msra.mxu0 %v111
    %148 = vmatprep.subr.mxu0 0.0
    %149 = vmatpush1.msra.mxu0 %v112
    %150 = vmatprep.subr.mxu0 0.0
    %151 = vmatpush1.msra.mxu0 %v113
    %152 = vmatprep.subr.mxu0 0.0
    %153 = vmatpush1.msra.mxu0 %v114
    %154 = vmatprep.subr.mxu0 0.0
    %155 = vmatpush1.msra.mxu0 %v115
    %156 = vmatprep.subr.mxu0 0.0
    %157 = vmatpush1.msra.mxu0 %v116
    %158 = vmatprep.subr.mxu0 0.0
    %159 = vmatpush1.msra.mxu0 %v117
    %160 = vmatprep.subr.mxu0 0.0
    %161 = vmatpush1.msra.mxu0 %v118
    %162 = vmatprep.subr.mxu0 0.0
    %163 = vmatpush1.msra.mxu0 %v119
    %164 = vmatprep.subr.mxu0 0.0
    %165 = vmatpush1.msra.mxu0 %v120
    %166 = vmatprep.subr.mxu0 0.0
    %167 = vmatpush1.msra.mxu0 %v121
    %168 = vmatprep.subr.mxu0 0.0
    %169 = vmatpush1.msra.mxu0 %v122
    %170 = vmatprep.subr.mxu0 0.0
    %171 = vmatpush1.msra.mxu0 %v123
    %172 = vmatprep.subr.mxu0 0.0
    %173 = vmatpush1.msra.mxu0 %v124
    %174 = vmatprep.subr.mxu0 0.0
    %175 = vmatpush1.msra.mxu0 %v125
    %176 = vmatprep.subr.mxu0 0.0
    %177 = vmatpush1.msra.mxu0 %v126
    %178 = vmatprep.subr.mxu0 0.0
    %179 = vmatpush1.msra.mxu0 %v127
    %180 = vmatprep.subr.mxu0 0.0
    %181 = vmatpush1.msra.mxu0 %v128
    %182 = vmatprep.subr.mxu0 0.0
    %183 = vmatpush1.msra.mxu0 %v129
    %184 = vmatprep.subr.mxu0 0.0
    %185 = vmatpush1.msra.mxu0 %v130
    %186 = vmatprep.subr.mxu0 0.0
    %187 = vmatpush1.msra.mxu0 %v131
    %188 = vmatprep.subr.mxu0 0.0
    %189 = vmatpush1.msra.mxu0 %v132
    %190 = vmatprep.subr.mxu0 0.0
    %191 = vmatpush1.msra.mxu0 %v133
    %192 = vmatprep.subr.mxu0 0.0
    %193 = vmatpush1.msra.mxu0 %v134
    %194 = vmatprep.subr.mxu0 0.0
    %195 = vmatpush1.msra.mxu0 %v135
    %196 = vmatprep.subr.mxu0 0.0
    %197 = vmatpush1.msra.mxu0 %v136
    %198 = vmatprep.subr.mxu0 0.0
    %199 = vmatpush1.msra.mxu0 %v137
    %200 = vmatprep.subr.mxu0 0.0
    %201 = vmatpush1.msra.mxu0 %v138
    %202 = vmatprep.subr.mxu0 0.0
    %203 = vmatpush1.msra.mxu0 %v139
    %204 = vmatprep.mubr.f32.mxu0 %v107
    %205 = vmatmul.mubr.f32.gmra.mrb[0].mxu0 %v106
    %v206 = vpop.f32.mrb[0].mxu0
    %v207 = vadd.f32 0.0, %v206
    %v208 = vpop.f32.mrb[0].mxu0
    %209 = vdwg.mxu0
    %v210 = vld [vmem:[%s0] sm:$0xff]
    %vm211 = vcmp.ne.s32.totalorder %v210, 0
    %v212 = vsel %vm211, %v207, -inf
    %vm213 = vcmask 64512
    %v214 = vsel %vm213, %v212, -inf
    %215 = vmax.xlane.f32.xlu0 %v214
    %v216 = vpop.xlane.xlu0 %215
    %v217 = vsub.f32 %v212, %v216
    %v218 = vmul.f32 %v217, 1.442695
    %v219 = vpow.pop %v218
    %v220 = vsel %vm213, %v219, 0.0
    %221 = vadd.xlane.f32.xlu0 %v220
    %v222 = vpop.xlane.xlu0 %221
    %v223 = vrcp.pop %v222
    %v224 = vmul.f32 %v219, %v223
    %v225 = vld [vmem:[%s6] sm:$0xff]
    %v226 = vld [vmem:[%s6 + $0x8] sm:$0xff]
    %v227 = vld [vmem:[%s6 + $0x10] sm:$0xff]
    %v228 = vld [vmem:[%s6 + $0x18] sm:$0xff]
    %v230 = vsel %vm213, %v224, 0
    %232 = vmatprep.subr.mxu0 %v226
    %233 = vmatpush1.msra.mxu0 %v225
    %234 = vmatprep.subr.mxu0 0.0
    %235 = vmatpush1.msra.mxu0 0.0
    %236 = vmatprep.subr.mxu0 0.0
    %237 = vmatpush1.msra.mxu0 0.0
    %238 = vmatprep.subr.mxu0 0.0
    %239 = vmatpush1.msra.mxu0 0.0
    %240 = vmatprep.subr.mxu0 0.0
    %241 = vmatpush1.msra.mxu0 0.0
    %242 = vmatprep.subr.mxu0 0.0
    %243 = vmatpush1.msra.mxu0 0.0
    %244 = vmatprep.subr.mxu0 0.0
    %245 = vmatpush1.msra.mxu0 0.0
    %246 = vmatprep.subr.mxu0 0.0
    %247 = vmatpush1.msra.mxu0 0.0
    %248 = vmatprep.subr.mxu0 0.0
    %249 = vmatpush1.msra.mxu0 0.0
    %250 = vmatprep.subr.mxu0 0.0
    %251 = vmatpush1.msra.mxu0 0.0
    %252 = vmatprep.subr.mxu0 0.0
    %253 = vmatpush1.msra.mxu0 0.0
    %254 = vmatprep.subr.mxu0 0.0
    %255 = vmatpush1.msra.mxu0 0.0
    %256 = vmatprep.subr.mxu0 0.0
    %257 = vmatpush1.msra.mxu0 0.0
    %258 = vmatprep.subr.mxu0 0.0
    %259 = vmatpush1.msra.mxu0 0.0
    %260 = vmatprep.subr.mxu0 0.0
    %261 = vmatpush1.msra.mxu0 0.0
    %262 = vmatprep.subr.mxu0 0.0
    %263 = vmatpush1.msra.mxu0 0.0
    %264 = vmatprep.subr.mxu0 0.0
    %265 = vmatpush1.msra.mxu0 0.0
    %266 = vmatprep.subr.mxu0 0.0
    %267 = vmatpush1.msra.mxu0 0.0
    %268 = vmatprep.subr.mxu0 0.0
    %269 = vmatpush1.msra.mxu0 0.0
    %270 = vmatprep.subr.mxu0 0.0
    %271 = vmatpush1.msra.mxu0 0.0
    %272 = vmatprep.subr.mxu0 0.0
    %273 = vmatpush1.msra.mxu0 0.0
    %274 = vmatprep.subr.mxu0 0.0
    %275 = vmatpush1.msra.mxu0 0.0
    %276 = vmatprep.subr.mxu0 0.0
    %277 = vmatpush1.msra.mxu0 0.0
    %278 = vmatprep.subr.mxu0 0.0
    %279 = vmatpush1.msra.mxu0 0.0
    %280 = vmatprep.subr.mxu0 0.0
    %281 = vmatpush1.msra.mxu0 0.0
    %282 = vmatprep.subr.mxu0 0.0
    %283 = vmatpush1.msra.mxu0 0.0
    %284 = vmatprep.subr.mxu0 0.0
    %285 = vmatpush1.msra.mxu0 0.0
    %286 = vmatprep.subr.mxu0 0.0
    %287 = vmatpush1.msra.mxu0 0.0
    %288 = vmatprep.subr.mxu0 0.0
    %289 = vmatpush1.msra.mxu0 0.0
    %290 = vmatprep.subr.mxu0 0.0
    %291 = vmatpush1.msra.mxu0 0.0
    %292 = vmatprep.subr.mxu0 0.0
    %293 = vmatpush1.msra.mxu0 0.0
    %294 = vmatprep.subr.mxu0 0.0
    %295 = vmatpush1.msra.mxu0 0.0
    %296 = vmatprep.mubr.f32.mxu0 0.0
    %297 = vmatmul.mubr.f32.gmra.mrb[0].mxu0 %v230
    %v298 = vpop.f32.mrb[0].mxu0
    %v299 = vadd.f32 0.0, %v298
    %v300 = vpop.f32.mrb[0].mxu0
    %v301 = vadd.f32 0.0, %v300
    %302 = vdwg.mxu0
    %303 = vmatprep.subr.mxu0 %v228
    %304 = vmatpush1.msra.mxu0 %v227
    %305 = vmatprep.subr.mxu0 0.0
    %306 = vmatpush1.msra.mxu0 0.0
    %307 = vmatprep.subr.mxu0 0.0
    %308 = vmatpush1.msra.mxu0 0.0
    %309 = vmatprep.subr.mxu0 0.0
    %310 = vmatpush1.msra.mxu0 0.0
    %311 = vmatprep.subr.mxu0 0.0
    %312 = vmatpush1.msra.mxu0 0.0
    %313 = vmatprep.subr.mxu0 0.0
    %314 = vmatpush1.msra.mxu0 0.0
    %315 = vmatprep.subr.mxu0 0.0
    %316 = vmatpush1.msra.mxu0 0.0
    %317 = vmatprep.subr.mxu0 0.0
    %318 = vmatpush1.msra.mxu0 0.0
    %319 = vmatprep.subr.mxu0 0.0
    %320 = vmatpush1.msra.mxu0 0.0
    %321 = vmatprep.subr.mxu0 0.0
    %322 = vmatpush1.msra.mxu0 0.0
    %323 = vmatprep.subr.mxu0 0.0
    %324 = vmatpush1.msra.mxu0 0.0
    %325 = vmatprep.subr.mxu0 0.0
    %326 = vmatpush1.msra.mxu0 0.0
    %327 = vmatprep.subr.mxu0 0.0
    %328 = vmatpush1.msra.mxu0 0.0
    %329 = vmatprep.subr.mxu0 0.0
    %330 = vmatpush1.msra.mxu0 0.0
    %331 = vmatprep.subr.mxu0 0.0
    %332 = vmatpush1.msra.mxu0 0.0
    %333 = vmatprep.subr.mxu0 0.0
    %334 = vmatpush1.msra.mxu0 0.0
    %335 = vmatprep.subr.mxu0 0.0
    %336 = vmatpush1.msra.mxu0 0.0
    %337 = vmatprep.subr.mxu0 0.0
    %338 = vmatpush1.msra.mxu0 0.0
    %339 = vmatprep.subr.mxu0 0.0
    %340 = vmatpush1.msra.mxu0 0.0
    %341 = vmatprep.subr.mxu0 0.0
    %342 = vmatpush1.msra.mxu0 0.0
    %343 = vmatprep.subr.mxu0 0.0
    %344 = vmatpush1.msra.mxu0 0.0
    %345 = vmatprep.subr.mxu0 0.0
    %346 = vmatpush1.msra.mxu0 0.0
    %347 = vmatprep.subr.mxu0 0.0
    %348 = vmatpush1.msra.mxu0 0.0
    %349 = vmatprep.subr.mxu0 0.0
    %350 = vmatpush1.msra.mxu0 0.0
    %351 = vmatprep.subr.mxu0 0.0
    %352 = vmatpush1.msra.mxu0 0.0
    %353 = vmatprep.subr.mxu0 0.0
    %354 = vmatpush1.msra.mxu0 0.0
    %355 = vmatprep.subr.mxu0 0.0
    %356 = vmatpush1.msra.mxu0 0.0
    %357 = vmatprep.subr.mxu0 0.0
    %358 = vmatpush1.msra.mxu0 0.0
    %359 = vmatprep.subr.mxu0 0.0
    %360 = vmatpush1.msra.mxu0 0.0
    %361 = vmatprep.subr.mxu0 0.0
    %362 = vmatpush1.msra.mxu0 0.0
    %363 = vmatprep.subr.mxu0 0.0
    %364 = vmatpush1.msra.mxu0 0.0
    %365 = vmatprep.subr.mxu0 0.0
    %366 = vmatpush1.msra.mxu0 0.0
    %367 = vmatprep.mubr.f32.mxu0 0.0
    %368 = vmatmul.mubr.f32.gmra.mrb[0].mxu0 %v230
    %v369 = vpop.f32.mrb[0].mxu0
    %v370 = vadd.f32 0.0, %v369
    %v371 = vpop.f32.mrb[0].mxu0
    %v372 = vadd.f32 0.0, %v371
    %373 = vdwg.mxu0
    %v374 = vld [vmem:[%s3] sm:$0xff]
    %v375 = vld [vmem:[%s3 + $0x8] sm:$0xff]
    %v376 = vunpack.c.l.bf16 %v374
    %v377 = vunpack.c.h.bf16 %v374
    %v378 = vunpack.c.l.bf16 %v375
    %v379 = vunpack.c.h.bf16 %v375
    %v380 = vmul.f32 %v299, %v376
    %v381 = vmul.f32 %v301, %v377
    %v382 = vmul.f32 %v370, %v378
    %v383 = vmul.f32 %v372, %v379
    %v384 = vld [vmem:[%s7] sm:$0xff]
    %v385 = vld [vmem:[%s7 + $0x8] sm:$0xff]
    %v386 = vld [vmem:[%s7 + $0x10] sm:$0xff]
    %v387 = vld [vmem:[%s7 + $0x18] sm:$0xff]
    %v388 = vld [vmem:[%s7 + $0x20] sm:$0xff]
    %v389 = vld [vmem:[%s7 + $0x28] sm:$0xff]
    %v390 = vld [vmem:[%s7 + $0x30] sm:$0xff]
    %v391 = vld [vmem:[%s7 + $0x38] sm:$0xff]
    %v392 = vld [vmem:[%s7 + $0x40] sm:$0xff]
    %v393 = vld [vmem:[%s7 + $0x48] sm:$0xff]
    %v394 = vld [vmem:[%s7 + $0x50] sm:$0xff]
    %v395 = vld [vmem:[%s7 + $0x58] sm:$0xff]
    %v396 = vld [vmem:[%s7 + $0x60] sm:$0xff]
    %v397 = vld [vmem:[%s7 + $0x68] sm:$0xff]
    %v398 = vld [vmem:[%s7 + $0x70] sm:$0xff]
    %v399 = vld [vmem:[%s7 + $0x78] sm:$0xff]
    %v400 = vld [vmem:[%s7 + $0x80] sm:$0xff]
    %v401 = vld [vmem:[%s7 + $0x88] sm:$0xff]
    %v402 = vld [vmem:[%s7 + $0x90] sm:$0xff]
    %v403 = vld [vmem:[%s7 + $0x98] sm:$0xff]
    %v404 = vld [vmem:[%s7 + $0xa0] sm:$0xff]
    %v405 = vld [vmem:[%s7 + $0xa8] sm:$0xff]
    %v406 = vld [vmem:[%s7 + $0xb0] sm:$0xff]
    %v407 = vld [vmem:[%s7 + $0xb8] sm:$0xff]
    %v408 = vld [vmem:[%s7 + $0xc0] sm:$0xff]
    %v409 = vld [vmem:[%s7 + $0xc8] sm:$0xff]
    %v410 = vld [vmem:[%s7 + $0xd0] sm:$0xff]
    %v411 = vld [vmem:[%s7 + $0xd8] sm:$0xff]
    %v412 = vld [vmem:[%s7 + $0xe0] sm:$0xff]
    %v413 = vld [vmem:[%s7 + $0xe8] sm:$0xff]
    %v414 = vld [vmem:[%s7 + $0xf0] sm:$0xff]
    %v415 = vld [vmem:[%s7 + $0xf8] sm:$0xff]
    %v416 = vld [vmem:[%s7 + $0x100] sm:$0xff]
    %v417 = vld [vmem:[%s7 + $0x108] sm:$0xff]
    %v418 = vld [vmem:[%s7 + $0x110] sm:$0xff]
    %v419 = vld [vmem:[%s7 + $0x118] sm:$0xff]
    %v420 = vld [vmem:[%s7 + $0x120] sm:$0xff]
    %v421 = vld [vmem:[%s7 + $0x128] sm:$0xff]
    %v422 = vld [vmem:[%s7 + $0x130] sm:$0xff]
    %v423 = vld [vmem:[%s7 + $0x138] sm:$0xff]
    %v424 = vld [vmem:[%s7 + $0x140] sm:$0xff]
    %v425 = vld [vmem:[%s7 + $0x148] sm:$0xff]
    %v426 = vld [vmem:[%s7 + $0x150] sm:$0xff]
    %v427 = vld [vmem:[%s7 + $0x158] sm:$0xff]
    %v428 = vld [vmem:[%s7 + $0x160] sm:$0xff]
    %v429 = vld [vmem:[%s7 + $0x168] sm:$0xff]
    %v430 = vld [vmem:[%s7 + $0x170] sm:$0xff]
    %v431 = vld [vmem:[%s7 + $0x178] sm:$0xff]
    %v432 = vld [vmem:[%s7 + $0x180] sm:$0xff]
    %v433 = vld [vmem:[%s7 + $0x188] sm:$0xff]
    %v434 = vld [vmem:[%s7 + $0x190] sm:$0xff]
    %v435 = vld [vmem:[%s7 + $0x198] sm:$0xff]
    %v436 = vld [vmem:[%s7 + $0x1a0] sm:$0xff]
    %v437 = vld [vmem:[%s7 + $0x1a8] sm:$0xff]
    %v438 = vld [vmem:[%s7 + $0x1b0] sm:$0xff]
    %v439 = vld [vmem:[%s7 + $0x1b8] sm:$0xff]
    %v440 = vld [vmem:[%s7 + $0x1c0] sm:$0xff]
    %v441 = vld [vmem:[%s7 + $0x1c8] sm:$0xff]
    %v442 = vld [vmem:[%s7 + $0x1d0] sm:$0xff]
    %v443 = vld [vmem:[%s7 + $0x1d8] sm:$0xff]
    %v444 = vld [vmem:[%s7 + $0x1e0] sm:$0xff]
    %v445 = vld [vmem:[%s7 + $0x1e8] sm:$0xff]
    %v446 = vld [vmem:[%s7 + $0x1f0] sm:$0xff]
    %v447 = vld [vmem:[%s7 + $0x1f8] sm:$0xff]
    %448 = vmatprep.subr.mxu0 0.0
    %449 = vmatpush1.msra.mxu0 %v384
    %450 = vmatprep.subr.mxu0 0.0
    %451 = vmatpush1.msra.mxu0 %v385
    %452 = vmatprep.subr.mxu0 0.0
    %453 = vmatpush1.msra.mxu0 %v386
    %454 = vmatprep.subr.mxu0 0.0
    %455 = vmatpush1.msra.mxu0 %v387
    %456 = vmatprep.subr.mxu0 0.0
    %457 = vmatpush1.msra.mxu0 %v388
    %458 = vmatprep.subr.mxu0 0.0
    %459 = vmatpush1.msra.mxu0 %v389
    %460 = vmatprep.subr.mxu0 0.0
    %461 = vmatpush1.msra.mxu0 %v390
    %462 = vmatprep.subr.mxu0 0.0
    %463 = vmatpush1.msra.mxu0 %v391
    %464 = vmatprep.subr.mxu0 0.0
    %465 = vmatpush1.msra.mxu0 %v392
    %466 = vmatprep.subr.mxu0 0.0
    %467 = vmatpush1.msra.mxu0 %v393
    %468 = vmatprep.subr.mxu0 0.0
    %469 = vmatpush1.msra.mxu0 %v394
    %470 = vmatprep.subr.mxu0 0.0
    %471 = vmatpush1.msra.mxu0 %v395
    %472 = vmatprep.subr.mxu0 0.0
    %473 = vmatpush1.msra.mxu0 %v396
    %474 = vmatprep.subr.mxu0 0.0
    %475 = vmatpush1.msra.mxu0 %v397
    %476 = vmatprep.subr.mxu0 0.0
    %477 = vmatpush1.msra.mxu0 %v398
    %478 = vmatprep.subr.mxu0 0.0
    %479 = vmatpush1.msra.mxu0 %v399
    %480 = vmatprep.subr.mxu0 0.0
    %481 = vmatpush1.msra.mxu0 %v400
    %482 = vmatprep.subr.mxu0 0.0
    %483 = vmatpush1.msra.mxu0 %v401
    %484 = vmatprep.subr.mxu0 0.0
    %485 = vmatpush1.msra.mxu0 %v402
    %486 = vmatprep.subr.mxu0 0.0
    %487 = vmatpush1.msra.mxu0 %v403
    %488 = vmatprep.subr.mxu0 0.0
    %489 = vmatpush1.msra.mxu0 %v404
    %490 = vmatprep.subr.mxu0 0.0
    %491 = vmatpush1.msra.mxu0 %v405
    %492 = vmatprep.subr.mxu0 0.0
    %493 = vmatpush1.msra.mxu0 %v406
    %494 = vmatprep.subr.mxu0 0.0
    %495 = vmatpush1.msra.mxu0 %v407
    %496 = vmatprep.subr.mxu0 0.0
    %497 = vmatpush1.msra.mxu0 %v408
    %498 = vmatprep.subr.mxu0 0.0
    %499 = vmatpush1.msra.mxu0 %v409
    %500 = vmatprep.subr.mxu0 0.0
    %501 = vmatpush1.msra.mxu0 %v410
    %502 = vmatprep.subr.mxu0 0.0
    %503 = vmatpush1.msra.mxu0 %v411
    %504 = vmatprep.subr.mxu0 0.0
    %505 = vmatpush1.msra.mxu0 %v412
    %506 = vmatprep.subr.mxu0 0.0
    %507 = vmatpush1.msra.mxu0 %v413
    %508 = vmatprep.subr.mxu0 0.0
    %509 = vmatpush1.msra.mxu0 %v414
    %510 = vmatprep.subr.mxu0 0.0
    %511 = vmatpush1.msra.mxu0 %v415
    %512 = vmatprep.mubr.f32.mxu0 %v381
    %513 = vmatmul.mubr.f32.gmra.mrb[0].mxu0 %v380
    %v514 = vpop.f32.mrb[0].mxu0
    %v515 = vadd.f32 0.0, %v514
    %v516 = vpop.f32.mrb[0].mxu0
    %517 = vdwg.mxu0
    %518 = vmatprep.subr.mxu0 0.0
    %519 = vmatpush1.msra.mxu0 %v416
    %520 = vmatprep.subr.mxu0 0.0
    %521 = vmatpush1.msra.mxu0 %v417
    %522 = vmatprep.subr.mxu0 0.0
    %523 = vmatpush1.msra.mxu0 %v418
    %524 = vmatprep.subr.mxu0 0.0
    %525 = vmatpush1.msra.mxu0 %v419
    %526 = vmatprep.subr.mxu0 0.0
    %527 = vmatpush1.msra.mxu0 %v420
    %528 = vmatprep.subr.mxu0 0.0
    %529 = vmatpush1.msra.mxu0 %v421
    %530 = vmatprep.subr.mxu0 0.0
    %531 = vmatpush1.msra.mxu0 %v422
    %532 = vmatprep.subr.mxu0 0.0
    %533 = vmatpush1.msra.mxu0 %v423
    %534 = vmatprep.subr.mxu0 0.0
    %535 = vmatpush1.msra.mxu0 %v424
    %536 = vmatprep.subr.mxu0 0.0
    %537 = vmatpush1.msra.mxu0 %v425
    %538 = vmatprep.subr.mxu0 0.0
    %539 = vmatpush1.msra.mxu0 %v426
    %540 = vmatprep.subr.mxu0 0.0
    %541 = vmatpush1.msra.mxu0 %v427
    %542 = vmatprep.subr.mxu0 0.0
    %543 = vmatpush1.msra.mxu0 %v428
    %544 = vmatprep.subr.mxu0 0.0
    %545 = vmatpush1.msra.mxu0 %v429
    %546 = vmatprep.subr.mxu0 0.0
    %547 = vmatpush1.msra.mxu0 %v430
    %548 = vmatprep.subr.mxu0 0.0
    %549 = vmatpush1.msra.mxu0 %v431
    %550 = vmatprep.subr.mxu0 0.0
    %551 = vmatpush1.msra.mxu0 %v432
    %552 = vmatprep.subr.mxu0 0.0
    %553 = vmatpush1.msra.mxu0 %v433
    %554 = vmatprep.subr.mxu0 0.0
    %555 = vmatpush1.msra.mxu0 %v434
    %556 = vmatprep.subr.mxu0 0.0
    %557 = vmatpush1.msra.mxu0 %v435
    %558 = vmatprep.subr.mxu0 0.0
    %559 = vmatpush1.msra.mxu0 %v436
    %560 = vmatprep.subr.mxu0 0.0
    %561 = vmatpush1.msra.mxu0 %v437
    %562 = vmatprep.subr.mxu0 0.0
    %563 = vmatpush1.msra.mxu0 %v438
    %564 = vmatprep.subr.mxu0 0.0
    %565 = vmatpush1.msra.mxu0 %v439
    %566 = vmatprep.subr.mxu0 0.0
    %567 = vmatpush1.msra.mxu0 %v440
    %568 = vmatprep.subr.mxu0 0.0
    %569 = vmatpush1.msra.mxu0 %v441
    %570 = vmatprep.subr.mxu0 0.0
    %571 = vmatpush1.msra.mxu0 %v442
    %572 = vmatprep.subr.mxu0 0.0
    %573 = vmatpush1.msra.mxu0 %v443
    %574 = vmatprep.subr.mxu0 0.0
    %575 = vmatpush1.msra.mxu0 %v444
    %576 = vmatprep.subr.mxu0 0.0
    %577 = vmatpush1.msra.mxu0 %v445
    %578 = vmatprep.subr.mxu0 0.0
    %579 = vmatpush1.msra.mxu0 %v446
    %580 = vmatprep.subr.mxu0 0.0
    %581 = vmatpush1.msra.mxu0 %v447
    %582 = vmatprep.mubr.f32.mxu0 %v383
    %583 = vmatmul.mubr.f32.gmra.mrb[0].mxu0 %v382
    %v584 = vpop.f32.mrb[0].mxu0
    %v585 = vadd.f32 %v515, %v584
    %v586 = vpop.f32.mrb[0].mxu0
    %587 = vdwg.mxu0
    %588 = vxpose.xlu0.b32.start [1/16] %v224, 128
    %589 = vxpose.xlu0.b32.cont [2/16] 0.0, 128
    %590 = vxpose.xlu0.b32.cont [3/16] 0.0, 128
    %591 = vxpose.xlu0.b32.cont [4/16] 0.0, 128
    %592 = vxpose.xlu0.b32.cont [5/16] 0.0, 128
    %593 = vxpose.xlu0.b32.cont [6/16] 0.0, 128
    %594 = vxpose.xlu0.b32.cont [7/16] 0.0, 128
    %595 = vxpose.xlu0.b32.cont [8/16] 0.0, 128
    %596 = vxpose.xlu0.b32.cont [9/16] 0.0, 128
    %597 = vxpose.xlu0.b32.cont [10/16] 0.0, 128
    %598 = vxpose.xlu0.b32.cont [11/16] 0.0, 128
    %599 = vxpose.xlu0.b32.cont [12/16] 0.0, 128
    %600 = vxpose.xlu0.b32.cont [13/16] 0.0, 128
    %601 = vxpose.xlu0.b32.cont [14/16] 0.0, 128
    %602 = vxpose.xlu0.b32.cont [15/16] 0.0, 128
    %603 = vxpose.xlu0.b32.end [16/16] 0.0, 128
    %v604 = vpop.trf.xlu0
    %v605 = vpop.trf.xlu0
    %v606 = vpop.trf.xlu0
    %v607 = vpop.trf.xlu0
    %v608 = vpop.trf.xlu0
    %v609 = vpop.trf.xlu0
    %v610 = vpop.trf.xlu0
    %v611 = vpop.trf.xlu0
    %v612 = vpop.trf.xlu0
    %v613 = vpop.trf.xlu0
    %v614 = vpop.trf.xlu0
    %v615 = vpop.trf.xlu0
    %v616 = vpop.trf.xlu0
    %v617 = vpop.trf.xlu0
    %v618 = vpop.trf.xlu0
    %v619 = vpop.trf.xlu0
    %620 = vst.msk [vmem:[#allocation2] sm:$0xff] %vm213, %v604
    %621 = vxpose.xlu0.b32.start [1/16] %v585, 128
    %622 = vxpose.xlu0.b32.cont [2/16] 0.0, 128
    %623 = vxpose.xlu0.b32.cont [3/16] 0.0, 128
    %624 = vxpose.xlu0.b32.cont [4/16] 0.0, 128
    %625 = vxpose.xlu0.b32.cont [5/16] 0.0, 128
    %626 = vxpose.xlu0.b32.cont [6/16] 0.0, 128
    %627 = vxpose.xlu0.b32.cont [7/16] 0.0, 128
    %628 = vxpose.xlu0.b32.cont [8/16] 0.0, 128
    %629 = vxpose.xlu0.b32.cont [9/16] 0.0, 128
    %630 = vxpose.xlu0.b32.cont [10/16] 0.0, 128
    %631 = vxpose.xlu0.b32.cont [11/16] 0.0, 128
    %632 = vxpose.xlu0.b32.cont [12/16] 0.0, 128
    %633 = vxpose.xlu0.b32.cont [13/16] 0.0, 128
    %634 = vxpose.xlu0.b32.cont [14/16] 0.0, 128
    %635 = vxpose.xlu0.b32.cont [15/16] 0.0, 128
    %636 = vxpose.xlu0.b32.end [16/16] 0.0, 128
    %v637 = vpop.trf.xlu0
    %v638 = vpop.trf.xlu0
    %v639 = vpop.trf.xlu0
    %v640 = vpop.trf.xlu0
    %v641 = vpop.trf.xlu0
    %v642 = vpop.trf.xlu0
    %v643 = vpop.trf.xlu0
    %v644 = vpop.trf.xlu0
    %v645 = vpop.trf.xlu0
    %v646 = vpop.trf.xlu0
    %v647 = vpop.trf.xlu0
    %v648 = vpop.trf.xlu0
    %v649 = vpop.trf.xlu0
    %v650 = vpop.trf.xlu0
    %v651 = vpop.trf.xlu0
    %v652 = vpop.trf.xlu0
    %653 = vst.msk [vmem:[%s8] sm:$0xff] %vm213, %v637
    %654 = vst.msk [vmem:[%s8 + $0x8] sm:$0xff] %vm213, %v638
    %655 = vst.msk [vmem:[%s8 + $0x10] sm:$0xff] %vm213, %v639
    %656 = vst.msk [vmem:[%s8 + $0x18] sm:$0xff] %vm213, %v640
    %657 = vst.msk [vmem:[%s8 + $0x20] sm:$0xff] %vm213, %v641
    %658 = vst.msk [vmem:[%s8 + $0x28] sm:$0xff] %vm213, %v642
    %659 = vst.msk [vmem:[%s8 + $0x30] sm:$0xff] %vm213, %v643
    %660 = vst.msk [vmem:[%s8 + $0x38] sm:$0xff] %vm213, %v644
    // Predicated region
    $region34: #{tpu_custom_call.1} parent=1 // pred_check
      _
    $region35: #{tpu_custom_call.1} parent=1 // pred_check_branch
      %662 = sbr.rel (0) target = $region37
    $region36: #{tpu_custom_call.1} parent=1 // pred_region
      _
    $region37: #{tpu_custom_call.1} parent=1 // pred_fallthru
      _
    // Predicated region
    $region38: #{tpu_custom_call.1} parent=1 // pred_check
      _
    $region39: #{tpu_custom_call.1} parent=1 // pred_check_branch
      %664 = sbr.rel (0) target = $region41
    $region40: #{tpu_custom_call.1} parent=1 // pred_region
      %s666 = ssub.s32 128, 128
      %667 = vsyncadd [#allocation3], %s666
      %s669 = sshll.u32 [#allocation2], 4
      %s670 = int_to_ptr.vmem [resolvable:$true] %s669
      %672 = dma.vmem_to_hbm [thread:$0]  %s670, 128, %s9, [#allocation3]
    $region41: #{tpu_custom_call.1} parent=1 // pred_fallthru
      _
    // Predicated region
    $region42: #{tpu_custom_call.1} parent=1 // pred_check
      _
    $region43: #{tpu_custom_call.1} parent=1 // pred_check_branch
      %674 = sbr.rel (0) target = $region45
    $region44: #{tpu_custom_call.1} parent=1 // pred_region
      _
    $region45: #{tpu_custom_call.1} parent=1 // pred_fallthru
      _
    // Predicated region
    $region46: #{tpu_custom_call.1} parent=1 // pred_check
      _
    $region47: #{tpu_custom_call.1} parent=1 // pred_check_branch
      %676 = sbr.rel (0) target = $region49
    $region48: #{tpu_custom_call.1} parent=1 // pred_region
      %677 = dma.done [#allocation3], 128
    $region49: #{tpu_custom_call.1} parent=1 // pred_fallthru
      _
    %678 = vsyncpa [#allocation3], 1

</llo_original>
